<compile_context>
chip_gen: v7x
topology: tpu7x:2x2x1
jax: 0.10.0
libtpu: 0.0.40
codegen_flags: <defaults>
</compile_context>

<pallas_src>
import jax
import jax.numpy as jnp
from jax.experimental import pallas as pl
from jax.experimental.pallas import tpu as pltpu


def _fuse_kernel(w_ref, bias_ref, x_ref, se_ref, o_ref):
    # w_ref:    (se_ch, edge_ch)  BN-scale-folded 1x1 conv weight (VMEM-resident)
    # bias_ref: (se_ch, 1)        folded BN bias, f32 (VMEM-resident)
    # x_ref:    (edge_ch, Thw)    tile of edge features (channels x pixels)
    # se_ref:   (se_ch, Thw)      tile of se features
    # o_ref:    (se_ch, Thw)      output tile
    y = jnp.dot(w_ref[...], x_ref[...], preferred_element_type=jnp.float32)
    y = jnp.maximum(y + bias_ref[...], 0.0)                      # folded BN bias + ReLU
    o_ref[...] = (y + se_ref[...].astype(jnp.float32)).astype(o_ref.dtype)


def _cdiv(a, b):
    return -(-a // b)


def _round_up(x, m):
    return ((x + m - 1) // m) * m


def _choose_tile_hw(HW, N, tile_hw):
    """Pick a lane-dense pixel tile.

    Goals (per perf review):
      * balanced blocks: round_up(ceil(HW / n_blocks), 128) instead of
        "full tile + tiny remainder";
      * megacore-aware: keep the total grid-step count N * n_blocks even when it
        can be done cheaply, so v7x's two TensorCores stay busy;
      * multiple of 128 lanes (unmasked vst) unless the whole extent fits in one
        block, in which case full extent is always legal.
    """
    if HW <= 128:
        return HW                                     # tiny input: one full-extent block
    max_blocks = _cdiv(HW, 128)
    n_blocks = min(_cdiv(HW, tile_hw), max_blocks)
    if (N * n_blocks) % 2 == 1 and n_blocks < max_blocks:
        n_blocks += 1                                 # even total step count for megacore
    thw = _round_up(_cdiv(HW, n_blocks), 128)         # balanced, lane-dense tile
    if thw >= HW:
        return HW                                     # single block: full extent
    return thw


def fuse_edgeinfo(edge_f, se_f, weight, bn_gamma, bn_beta, bn_mean, bn_var,
                  eps=1e-5, tile_hw=None):
    """edge_f: (N, edge_ch, H, W); se_f: (N, se_ch, H, W); weight: (se_ch, edge_ch)."""
    N, edge_ch, H, W = edge_f.shape
    se_ch = se_f.shape[1]
    assert se_f.shape == (N, se_ch, H, W)
    assert weight.shape == (se_ch, edge_ch)

    HW = H * W
    itemsize_x = jnp.dtype(edge_f.dtype).itemsize
    itemsize_se = jnp.dtype(se_f.dtype).itemsize
    itemsize_o = itemsize_se                              # output matches se_f dtype

    # Generation-agnostic default tile: bigger when the HBM streams are narrower.
    if tile_hw is None:
        tile_hw = 8192 if max(itemsize_x, itemsize_se) < 4 else 4096
    tile_hw = max(128, tile_hw)

    # Free reshapes only: keep native NCHW memory layout (no HBM transpose passes).
    x = edge_f.reshape(N, edge_ch, HW)
    se = se_f.reshape(N, se_ch, HW)

    # Fold eval-mode BN into the conv weight and a per-channel bias.
    scale = (bn_gamma.astype(jnp.float32) /
             jnp.sqrt(bn_var.astype(jnp.float32) + eps))                   # (se_ch,)
    w_folded = (weight.astype(jnp.float32) * scale[:, None]).astype(edge_f.dtype)
    bias = (bn_beta.astype(jnp.float32)
            - bn_mean.astype(jnp.float32) * scale).reshape(se_ch, 1)       # f32

    # Balanced, lane-dense, megacore-aware pixel tile.
    thw = _choose_tile_hw(HW, N, tile_hw)

    # VMEM budget derived from the real footprint and the actual chip's capacity
    # (64 MiB/TC on v7x, 128 MiB on v5e/v6e).  Auto-shrink the tile if needed.
    try:
        vmem_cap = int(pltpu.get_tpu_info().vmem_capacity_bytes)
    except Exception:  # pragma: no cover - be safe if the query is unavailable
        vmem_cap = 64 * 1024 * 1024
    bytes_per_pixel = edge_ch * itemsize_x + se_ch * (itemsize_se + itemsize_o)
    if thw % 128 == 0:
        budget = int(0.45 * vmem_cap)
        while thw > 128 and 2 * thw * bytes_per_pixel > budget:
            thw = max(128, _round_up(thw // 2, 128))
    resident = 2 * (se_ch * edge_ch * itemsize_x + se_ch * 4)      # weight + bias (dbuf)
    footprint = 2 * thw * bytes_per_pixel + resident               # double-buffered tiles
    vmem_limit = min(max(2 * footprint, 32 * 1024 * 1024), int(0.8 * vmem_cap))
    vmem_limit = max(vmem_limit, footprint + (4 << 20))

    grid = (N, _cdiv(HW, thw))   # no padding: any partial last block is masked by Pallas

    # Advisory cost hint: this op is purely HBM-bandwidth bound.
    cost = pl.CostEstimate(
        flops=2 * N * se_ch * edge_ch * HW,
        transcendentals=0,
        bytes_accessed=N * HW * bytes_per_pixel + se_ch * edge_ch * itemsize_x + se_ch * 4,
    )

    out_flat = pl.pallas_call(
        _fuse_kernel,
        out_shape=jax.ShapeDtypeStruct((N, se_ch, HW), se_f.dtype),
        grid_spec=pltpu.PrefetchScalarGridSpec(
            num_scalar_prefetch=0,
            grid=grid,
            in_specs=[
                pl.BlockSpec((se_ch, edge_ch), lambda n, j: (0, 0)),         # folded W
                pl.BlockSpec((se_ch, 1), lambda n, j: (0, 0)),               # folded bias
                pl.BlockSpec((None, edge_ch, thw), lambda n, j: (n, 0, j)),  # edge tile
                pl.BlockSpec((None, se_ch, thw), lambda n, j: (n, 0, j)),    # se tile
            ],
            out_specs=pl.BlockSpec((None, se_ch, thw), lambda n, j: (n, 0, j)),
        ),
        compiler_params=pltpu.CompilerParams(
            dimension_semantics=("parallel", "parallel"),
            vmem_limit_bytes=vmem_limit,
        ),
        cost_estimate=cost,
    )(w_folded, bias, x, se)

    return out_flat.reshape(N, se_ch, H, W)


def _reference(edge_f, se_f, weight, gamma, beta, mean, var, eps=1e-5):
    # Pure-JAX f32 reference of ReLU(BN(Conv1x1(edge_f))) + se_f in NCHW.
    y = jnp.einsum('nchw,oc->nohw', edge_f.astype(jnp.float32),
                   weight.astype(jnp.float32))
    scale = gamma / jnp.sqrt(var + eps)
    bias = beta - mean * scale
    y = y * scale[None, :, None, None] + bias[None, :, None, None]
    y = jnp.maximum(y, 0.0)
    return y + se_f.astype(jnp.float32)


if __name__ == "__main__":
    key = jax.random.PRNGKey(0)
    k1, k2, k3, k4, k5, k6, k7, k8, k9 = jax.random.split(key, 9)

    # Shapes consistent with the module defaults (edge_ch=64 -> se_ch=128 1x1 conv).
    N, H, W = 2, 16, 16
    edge_ch, se_ch = 64, 128

    edge_f = jax.random.normal(k1, (N, edge_ch, H, W), dtype=jnp.float32)
    se_f = jax.random.normal(k2, (N, se_ch, H, W), dtype=jnp.float32)

    weight = 0.05 * jax.random.normal(k3, (se_ch, edge_ch), dtype=jnp.float32)
    bn_gamma = 1.0 + 0.1 * jax.random.normal(k4, (se_ch,), dtype=jnp.float32)
    bn_beta = 0.1 * jax.random.normal(k5, (se_ch,), dtype=jnp.float32)
    bn_mean = 0.1 * jax.random.normal(k6, (se_ch,), dtype=jnp.float32)
    bn_var = jnp.abs(jax.random.normal(k7, (se_ch,), dtype=jnp.float32)) + 0.5

    ref = _reference(edge_f, se_f, weight, bn_gamma, bn_beta, bn_mean, bn_var)

    # 1) f32 streaming path.
    out = fuse_edgeinfo(edge_f, se_f, weight, bn_gamma, bn_beta, bn_mean, bn_var)
    out = jax.block_until_ready(out)
    assert out.shape == (N, se_ch, H, W)
    assert jnp.allclose(out, ref, atol=1e-4, rtol=1e-4), "f32 mismatch vs reference"

    # 2) bf16 streaming path (half the HBM bytes); f32 accumulate/epilogue inside.
    out_bf16 = fuse_edgeinfo(edge_f.astype(jnp.bfloat16), se_f.astype(jnp.bfloat16),
                             weight, bn_gamma, bn_beta, bn_mean, bn_var)
    out_bf16 = jax.block_until_ready(out_bf16)
    assert out_bf16.dtype == jnp.bfloat16
    assert jnp.allclose(out_bf16.astype(jnp.float32), ref, atol=1e-1, rtol=5e-2), \
        "bf16 mismatch vs reference"

    # 3) Awkward H*W (not a multiple of 128): single balanced full-extent block,
    #    no wasteful "384 + 16" tail step.
    H2, W2 = 20, 20
    edge2 = jax.random.normal(k8, (N, edge_ch, H2, W2), dtype=jnp.float32)
    se2 = jax.random.normal(k9, (N, se_ch, H2, W2), dtype=jnp.float32)
    out2 = fuse_edgeinfo(edge2, se2, weight, bn_gamma, bn_beta, bn_mean, bn_var)
    out2 = jax.block_until_ready(out2)
    ref2 = _reference(edge2, se2, weight, bn_gamma, bn_beta, bn_mean, bn_var)
    assert out2.shape == (N, se_ch, H2, W2)
    assert jnp.allclose(out2, ref2, atol=1e-4, rtol=1e-4), "partial-extent mismatch"

    # 4) Multi-block + forced small tile (exercises balanced tiling and the
    #    megacore even-step heuristic with N=2, several blocks).
    out3 = fuse_edgeinfo(edge2, se2, weight, bn_gamma, bn_beta, bn_mean, bn_var,
                         tile_hw=128)
    out3 = jax.block_until_ready(out3)
    assert jnp.allclose(out3, ref2, atol=1e-4, rtol=1e-4), "multi-block mismatch"

    print("KERNEL_OK")
</pallas_src>

<mosaic_0001>
module attributes {stable_mosaic.version = 11 : i64} {
  func.func @_fuse_kernel(%arg0: i32, %arg1: i32, %arg2: memref<128x64xf32, #tpu.memory_space<vmem>>, %arg3: memref<128x1xf32, #tpu.memory_space<vmem>>, %arg4: memref<1x64x256xf32, #tpu.memory_space<vmem>>, %arg5: memref<1x128x256xf32, #tpu.memory_space<vmem>>, %arg6: memref<1x128x256xf32, #tpu.memory_space<vmem>>) attributes {dimension_semantics = [#tpu.dimension_semantics<parallel>, #tpu.dimension_semantics<parallel>], iteration_bounds = array<i64: 2, 1>, scalar_prefetch = 0 : i64, scratch_operands = 0 : i64, tpu.core_type = #tpu.core_type<tc>, window_params = [{pipeline_mode = #tpu.pipeline_mode<synchronous>, transform_indices = @transform_0, window_bounds = array<i64: 128, 64>}, {pipeline_mode = #tpu.pipeline_mode<synchronous>, transform_indices = @transform_1, window_bounds = array<i64: 128, 1>}, {transform_indices = @transform_2, window_bounds = array<i64: 1, 64, 256>}, {transform_indices = @transform_3, window_bounds = array<i64: 1, 128, 256>}, {transform_indices = @transform_4, window_bounds = array<i64: 1, 128, 256>}]} {
    %c0 = arith.constant 0 : index
    %c0_0 = arith.constant 0 : index
    %0 = vector.load %arg2[%c0, %c0_0] : memref<128x64xf32, #tpu.memory_space<vmem>>, vector<128x64xf32>
    %c0_1 = arith.constant 0 : index
    %c0_2 = arith.constant 0 : index
    %c0_3 = arith.constant 0 : index
    %1 = vector.load %arg4[%c0_1, %c0_2, %c0_3] : memref<1x64x256xf32, #tpu.memory_space<vmem>>, vector<1x64x256xf32>
    %2 = vector.shape_cast %1 : vector<1x64x256xf32> to vector<64x256xf32>
    %cst = arith.constant dense<0.000000e+00> : vector<128x256xf32>
    %3 = tpu.matmul %0, %2, %cst {dimension_numbers = #tpu.dot_dimension_numbers<[1], [0], [0], [1], [0, 0, 1, 1], [], []>} : vector<128x64xf32>, vector<64x256xf32>, vector<128x256xf32> -> vector<128x256xf32>
    %c0_4 = arith.constant 0 : index
    %c0_5 = arith.constant 0 : index
    %4 = vector.load %arg3[%c0_4, %c0_5] : memref<128x1xf32, #tpu.memory_space<vmem>>, vector<128x1xf32>
    %5 = vector.broadcast %4 : vector<128x1xf32> to vector<128x256xf32>
    %6 = arith.addf %3, %5 : vector<128x256xf32>
    %cst_6 = arith.constant 0.000000e+00 : f32
    %7 = vector.broadcast %cst_6 : f32 to vector<128x256xf32>
    %8 = arith.maximumf %6, %7 : vector<128x256xf32>
    %c0_7 = arith.constant 0 : index
    %c0_8 = arith.constant 0 : index
    %c0_9 = arith.constant 0 : index
    %9 = vector.load %arg5[%c0_7, %c0_8, %c0_9] : memref<1x128x256xf32, #tpu.memory_space<vmem>>, vector<1x128x256xf32>
    %10 = vector.shape_cast %9 : vector<1x128x256xf32> to vector<128x256xf32>
    %11 = arith.addf %8, %10 : vector<128x256xf32>
    %c0_10 = arith.constant 0 : index
    %c0_11 = arith.constant 0 : index
    %c0_12 = arith.constant 0 : index
    %12 = vector.load %arg6[%c0_10, %c0_11, %c0_12] : memref<1x128x256xf32, #tpu.memory_space<vmem>>, vector<1x128x256xf32>
    %13 = vector.shape_cast %12 : vector<1x128x256xf32> to vector<128x256xf32>
    %14 = vector.shape_cast %11 : vector<128x256xf32> to vector<1x128x256xf32>
    tpu.vector_store %arg6[%c0_10, %c0_11, %c0_12], %14 {strides = array<i32>} : memref<1x128x256xf32, #tpu.memory_space<vmem>>, vector<1x128x256xf32>,
    return
  }
  func.func @transform_0(%arg0: i32, %arg1: i32) -> (i32, i32) {
    %c0_i32 = arith.constant 0 : i32
    %c0_i32_0 = arith.constant 0 : i32
    %c0_i32_1 = arith.constant 0 : i32
    return %c0_i32, %c0_i32_0 : i32, i32
  }
  func.func @transform_1(%arg0: i32, %arg1: i32) -> (i32, i32) {
    %c0_i32 = arith.constant 0 : i32
    %c0_i32_0 = arith.constant 0 : i32
    %c0_i32_1 = arith.constant 0 : i32
    return %c0_i32, %c0_i32_0 : i32, i32
  }
  func.func @transform_2(%arg0: i32, %arg1: i32) -> (i32, i32, i32) {
    %c0_i32 = arith.constant 0 : i32
    %c0_i32_0 = arith.constant 0 : i32
    return %arg0, %c0_i32, %arg1 : i32, i32, i32
  }
  func.func @transform_3(%arg0: i32, %arg1: i32) -> (i32, i32, i32) {
    %c0_i32 = arith.constant 0 : i32
    %c0_i32_0 = arith.constant 0 : i32
    return %arg0, %c0_i32, %arg1 : i32, i32, i32
  }
  func.func @transform_4(%arg0: i32, %arg1: i32) -> (i32, i32, i32) {
    %c0_i32 = arith.constant 0 : i32
    %c0_i32_0 = arith.constant 0 : i32
    return %arg0, %c0_i32, %arg1 : i32, i32, i32
  }
}

</mosaic_0001>

<llo_original>
// kernel: tpu_custom_call.1
$region0: #{tpu_custom_call.1}
  #allocation0 [shape = 'u32[]', space=smem, size = 0x4, offset = 0x4, fixed_abs, tag = 'smem constant byte address 0x4 - core index']
  #allocation1 [shape = 'u32[144,128]{1,0:T(1,128)}', space=vmem, size = 0x12000, scoped, tag = 'internal scratch']
  %s0 = inlined_call_operand.vmem [shape: f32[128,64], index: 0, kind: input, shape index: {}]
  %s1 = inlined_call_operand.vmem [shape: f32[128,1], index: 1, kind: input, shape index: {}]
  %s2 = inlined_call_operand.vmem [shape: f32[2,64,256], index: 2, kind: input, shape index: {}]
  %s3 = inlined_call_operand.hbm [shape: f32[2,128,256], index: 3, kind: input, shape index: {}]
  %s4 = inlined_call_operand.hbm [shape: f32[2,128,256], index: 4, kind: output, shape index: {}]
  %s5 = sld [smem:[#allocation0]]
  $region53: #{tpu_custom_call.1} parent=0
    _
  %s7 = ssub.s32 1, %s5
  %s8 = scalar_select 0, %s7, %s5
  $region1: #{tpu_custom_call.1} parent=0
    #allocation2 [shape = 'u8[262144]{0}', space=vmem, size = 0x40000, scoped, tag = 'input window, operand 3']
    #allocation3 [shape = 's32[2]{0}', space=sflag, size = 0x8, scoped, tag = 'scoped memory for tpu_custom_call.1']
    #allocation4 [shape = 's32[2]{0}', space=sflag, size = 0x8, scoped, tag = 'scoped memory for tpu_custom_call.1']
    #allocation5 [shape = 'u8[262144]{0}', space=vmem, size = 0x40000, scoped, tag = 'output window, operand 0']
    %9 = vsyncpa [#allocation3], 0
    %s10 = scalar_lea.sflag [#allocation3], 1
    %11 = vsyncpa %s10, 0
    %12 = vsyncpa [#allocation4], 0
    %s13 = scalar_lea.sflag [#allocation4], 1
    %14 = vsyncpa %s13, 0
    loop: start=0, step=1, limit=4
    $region2: #{tpu_custom_call.1} parent=1 // loop_pre_header
      _
    $region3: #{tpu_custom_call.1} parent=1 // loop_header
      %s16 = sphi 0, %s20
      %p17 = scmp.ge.s32.totalorder %s16, 4
      %s23 = sphi 0, %s35
      %s24 = sphi 0, %s31
      %s25 = sphi 0, %s23
      %s26 = sphi 0, %s24
      %s27 = sphi 0, %s25
      %s28 = sphi 0, %s26
      %s36 = sphi 0, %s36
      %s38 = sphi 0, %s36
      %s39 = sphi 0, %s38
      %s53 = sphi 0, %s39
      %s57 = sphi 0, %s57
      %s59 = sphi 0, %s57
      %s60 = sphi 0, %s59
      %s74 = sphi 0, %s60
      %s82 = sphi 0, %s84
      %s85 = sphi 0, %s82
      %s86 = sphi 0, %s85
      %s102 = sphi 0, %s86
      %s110 = sphi 0, %s112
      %s113 = sphi 0, %s110
      %s114 = sphi 0, %s113
      %s130 = sphi 0, %s114
      %s138 = sphi 0, %s140
      %s141 = sphi 0, %s138
      %s142 = sphi 0, %s141
      %s158 = sphi 0, %s142
    $region4: #{tpu_custom_call.1} parent=1 // loop_header_branch
      %19 = sbr.rel (%p17) target = $region8
    $region5: #{tpu_custom_call.1} parent=1 // loop_body
      %s21 = ssub.s32 %s16, 1
      %s22 = ssub.s32 %s16, 2
      %s29 = sadd.s32 1, %s24
      %p30 = scmp.ge.s32.totalorder %s29, 1
      %s31 = scalar_select %p30, 0, %s29
      %s32 = sadd.s32 1, %s23
      %s33 = scalar_select %p30, %s32, %s23
      %p34 = scmp.ge.s32.totalorder %s33, 2
      %s35 = scalar_select %p34, 0, %s33
      %s37 = sadd.s32 %s36, 1
      %p40 = scmp.eq.s32.totalorder %s16, 1
      %p41 = scmp.ne.s32.totalorder %s36, %s38
      %p42 = scmp.eq.s32.totalorder %s16, 0
      %p43 = por %p41, %p42
      %p44 = scmp.ne.s32.totalorder %s36, %s38
      %p45 = scmp.eq.s32.totalorder %s21, 1
      %p46 = por %p44, %p45
      %p47 = scmp.ne.s32.totalorder %s38, %s39
      %p48 = scmp.eq.s32.totalorder %s21, 0
      %p49 = por %p47, %p48
      %p50 = scmp.ne.s32.totalorder %s38, %s39
      %p51 = scmp.eq.s32.totalorder %s22, 1
      %p52 = por %p50, %p51
      %p54 = scmp.ne.s32.totalorder %s39, %s53
      %p55 = scmp.eq.s32.totalorder %s22, 0
      %p56 = por %p54, %p55
      %s58 = sadd.s32 %s57, 1
      %p61 = scmp.eq.s32.totalorder %s16, 1
      %p62 = scmp.ne.s32.totalorder %s57, %s59
      %p63 = scmp.eq.s32.totalorder %s16, 0
      %p64 = por %p62, %p63
      %p65 = scmp.ne.s32.totalorder %s57, %s59
      %p66 = scmp.eq.s32.totalorder %s21, 1
      %p67 = por %p65, %p66
      %p68 = scmp.ne.s32.totalorder %s59, %s60
      %p69 = scmp.eq.s32.totalorder %s21, 0
      %p70 = por %p68, %p69
      %p71 = scmp.ne.s32.totalorder %s59, %s60
      %p72 = scmp.eq.s32.totalorder %s22, 1
      %p73 = por %p71, %p72
      %p75 = scmp.ne.s32.totalorder %s60, %s74
      %p76 = scmp.eq.s32.totalorder %s22, 0
      %p77 = por %p75, %p76
      %s78 = ssub.s32 %s23, %s35
      %s79 = ssub.s32 %s24, %s31
      %s80 = sor.u32 %s78, %s79
      %p81 = scmp.eq.s32.totalorder %s80, 0
      %s83 = sadd.s32 %s82, 1
      %s84 = scalar_select %p81, %s82, %s83
      %p87 = pneg %p81
      %p88 = scmp.eq.s32.totalorder %s16, 1
      %p89 = por %p87, %p88
      %p90 = scmp.ne.s32.totalorder %s82, %s85
      %p91 = scmp.eq.s32.totalorder %s16, 0
      %p92 = por %p90, %p91
      %p93 = scmp.ne.s32.totalorder %s82, %s85
      %p94 = scmp.eq.s32.totalorder %s21, 1
      %p95 = por %p93, %p94
      %p96 = scmp.ne.s32.totalorder %s85, %s86
      %p97 = scmp.eq.s32.totalorder %s21, 0
      %p98 = por %p96, %p97
      %p99 = scmp.ne.s32.totalorder %s85, %s86
      %p100 = scmp.eq.s32.totalorder %s22, 1
      %p101 = por %p99, %p100
      %p103 = scmp.ne.s32.totalorder %s86, %s102
      %p104 = scmp.eq.s32.totalorder %s22, 0
      %p105 = por %p103, %p104
      %s106 = ssub.s32 %s23, %s35
      %s107 = ssub.s32 %s24, %s31
      %s108 = sor.u32 %s106, %s107
      %p109 = scmp.eq.s32.totalorder %s108, 0
      %s111 = sadd.s32 %s110, 1
      %s112 = scalar_select %p109, %s110, %s111
      %p115 = pneg %p109
      %p116 = scmp.eq.s32.totalorder %s16, 1
      %p117 = por %p115, %p116
      %p118 = scmp.ne.s32.totalorder %s110, %s113
      %p119 = scmp.eq.s32.totalorder %s16, 0
      %p120 = por %p118, %p119
      %p121 = scmp.ne.s32.totalorder %s110, %s113
      %p122 = scmp.eq.s32.totalorder %s21, 1
      %p123 = por %p121, %p122
      %p124 = scmp.ne.s32.totalorder %s113, %s114
      %p125 = scmp.eq.s32.totalorder %s21, 0
      %p126 = por %p124, %p125
      %p127 = scmp.ne.s32.totalorder %s113, %s114
      %p128 = scmp.eq.s32.totalorder %s22, 1
      %p129 = por %p127, %p128
      %p131 = scmp.ne.s32.totalorder %s114, %s130
      %p132 = scmp.eq.s32.totalorder %s22, 0
      %p133 = por %p131, %p132
      %s134 = ssub.s32 %s23, %s35
      %s135 = ssub.s32 %s24, %s31
      %s136 = sor.u32 %s134, %s135
      %p137 = scmp.eq.s32.totalorder %s136, 0
      %s139 = sadd.s32 %s138, 1
      %s140 = scalar_select %p137, %s138, %s139
      %p143 = pneg %p137
      %p144 = scmp.eq.s32.totalorder %s16, 1
      %p145 = por %p143, %p144
      %p146 = scmp.ne.s32.totalorder %s138, %s141
      %p147 = scmp.eq.s32.totalorder %s16, 0
      %p148 = por %p146, %p147
      %p149 = scmp.ne.s32.totalorder %s138, %s141
      %p150 = scmp.eq.s32.totalorder %s21, 1
      %p151 = por %p149, %p150
      %p152 = scmp.ne.s32.totalorder %s141, %s142
      %p153 = scmp.eq.s32.totalorder %s21, 0
      %p154 = por %p152, %p153
      %p155 = scmp.ne.s32.totalorder %s141, %s142
      %p156 = scmp.eq.s32.totalorder %s22, 1
      %p157 = por %p155, %p156
      %p159 = scmp.ne.s32.totalorder %s142, %s158
      %p160 = scmp.eq.s32.totalorder %s22, 0
      %p161 = por %p159, %p160
      %p162 = scmp.le.s32.totalorder 1, %s16
      %p163 = scmp.lt.s32.totalorder %s16, 3
      %p164 = pnand %p162, %p163
      %p165 = pneg %p164
      // Predicated region
      $region9: #{tpu_custom_call.1} parent=5 // pred_check
        _
      $region10: #{tpu_custom_call.1} parent=5 // pred_check_branch
        %167 = sbr.rel (%p164) target = $region12
      $region11: #{tpu_custom_call.1} parent=5 // pred_region
        %s168 = ssub.s32 %s16, 1
        // Predicated region
        $region13: #{tpu_custom_call.1} parent=11 // pred_check
          %p169 = pneg %p49
        $region14: #{tpu_custom_call.1} parent=11 // pred_check_branch
          %171 = sbr.rel (%p169) target = $region16
        $region15: #{tpu_custom_call.1} parent=11 // pred_region
          _
        $region16: #{tpu_custom_call.1} parent=11 // pred_fallthru
          _
        // Predicated region
        $region17: #{tpu_custom_call.1} parent=11 // pred_check
          %p172 = pneg %p70
        $region18: #{tpu_custom_call.1} parent=11 // pred_check_branch
          %174 = sbr.rel (%p172) target = $region20
        $region19: #{tpu_custom_call.1} parent=11 // pred_region
          _
        $region20: #{tpu_custom_call.1} parent=11 // pred_fallthru
          _
      $region12: #{tpu_custom_call.1} parent=5 // pred_fallthru
        _
      %p175 = scmp.lt.s32.totalorder %s16, 2
      // Predicated region
      $region21: #{tpu_custom_call.1} parent=5 // pred_check
        %p176 = pneg %p175
      $region22: #{tpu_custom_call.1} parent=5 // pred_check_branch
        %178 = sbr.rel (%p176) target = $region24
      $region23: #{tpu_custom_call.1} parent=5 // pred_region
        // Predicated region
        $region25: #{tpu_custom_call.1} parent=23 // pred_check
          %p179 = pneg %p92
        $region26: #{tpu_custom_call.1} parent=23 // pred_check_branch
          %181 = sbr.rel (%p179) target = $region28
        $region27: #{tpu_custom_call.1} parent=23 // pred_region
          %s182 = smul.u32 2, %s24
          %p183 = scmp.lt.s32.totalorder %s23, 1
          %s184 = scalar_select %p183, %s23, 1
          %p185 = scmp.lt.s32.totalorder %s182, 1
          %s186 = scalar_select %p185, %s182, 1
          %s187 = smul.addr %s184, 16
          %s188 = sadd.s32 %s186, %s187
          %s189 = smul.addr %s188, 8
          %s190 = scalar_lea.vmem %s2, %s189
          %s191 = smul.u32 2, %s24
        $region28: #{tpu_custom_call.1} parent=23 // pred_fallthru
          _
        // Predicated region
        $region29: #{tpu_custom_call.1} parent=23 // pred_check
          %p192 = pneg %p120
        $region30: #{tpu_custom_call.1} parent=23 // pred_check_branch
          %194 = sbr.rel (%p192) target = $region32
        $region31: #{tpu_custom_call.1} parent=23 // pred_region
          %s195 = sand.u32 %s110, 1
          %s196 = scalar_lea.sflag [#allocation3], %s195
          %s197 = sand.u32 %s110, 1
          %s198 = smul.addr %s197, 256
          %s199 = scalar_lea.vmem [#allocation2], %s198
          %s200 = smul.u32 2, %s24
          %s202 = ssub.s32 4096, 4096
          %203 = vsyncadd %s196, %s202
          %s204 = smul.addr %s23, 32
          %s205 = sadd.s32 %s200, %s204
          %s206 = smul.addr %s205, 128
          %s207 = scalar_lea.hbm %s3, %s206
          %s208 = sshll.u32 %s199, 4
          %s209 = int_to_ptr.vmem [resolvable:$true] %s208
          %214 = dma.hbm_to_vmem [thread:$0]  %s207, 4096, %s209, %s196, 256, 256, 16
        $region32: #{tpu_custom_call.1} parent=23 // pred_fallthru
          _
      $region24: #{tpu_custom_call.1} parent=5 // pred_fallthru
        _
      %p215 = scmp.le.s32.totalorder 1, %s16
      %p216 = scmp.lt.s32.totalorder %s16, 3
      %p217 = pnand %p215, %p216
      %p218 = pneg %p217
      // Predicated region
      $region33: #{tpu_custom_call.1} parent=5 // pred_check
        _
      $region34: #{tpu_custom_call.1} parent=5 // pred_check_branch
        %220 = sbr.rel (%p217) target = $region36
      $region35: #{tpu_custom_call.1} parent=5 // pred_region
        %s221 = ssub.s32 %s16, 1
        %s222 = sand.u32 %s113, 1
        %s223 = scalar_lea.sflag [#allocation3], %s222
        %s224 = sand.u32 %s113, 1
        %s225 = smul.addr %s224, 256
        %s226 = scalar_lea.vmem [#allocation2], %s225
        // Predicated region
        $region37: #{tpu_custom_call.1} parent=35 // pred_check
          %p227 = pneg %p126
        $region38: #{tpu_custom_call.1} parent=35 // pred_check_branch
          %229 = sbr.rel (%p227) target = $region40
        $region39: #{tpu_custom_call.1} parent=35 // pred_region
          %230 = dma.done %s223, 4096
        $region40: #{tpu_custom_call.1} parent=35 // pred_fallthru
          _
        %p231 = pneg %p49
        %p232 = pneg %p46
        %p233 = pneg %p70
        %p234 = pneg %p67
        %s235 = smul.u32 2, %s26
        %p236 = scmp.lt.s32.totalorder %s25, 1
        %s237 = scalar_select %p236, %s25, 1
        %p238 = scmp.lt.s32.totalorder %s235, 1
        %s239 = scalar_select %p238, %s235, 1
        %s240 = smul.addr %s237, 16
        %s241 = sadd.s32 %s239, %s240
        %s242 = smul.addr %s241, 8
        %s243 = scalar_lea.vmem %s2, %s242
        %p244 = pneg %p98
        %p245 = pneg %p95
        %s246 = sand.u32 %s113, 1
        %s247 = scalar_lea.sflag [#allocation3], %s246
        %s248 = sand.u32 %s113, 1
        %s249 = smul.addr %s248, 256
        %s250 = scalar_lea.vmem [#allocation2], %s249
        %p251 = pneg %p126
        %p252 = pneg %p123
        %p253 = pneg %p154
        %p254 = pneg %p151
        %s255 = sand.u32 %s141, 1
        %s256 = scalar_lea.sflag [#allocation4], %s255
        %s257 = sand.u32 %s141, 1
        %s258 = smul.addr %s257, 256
        %s259 = scalar_lea.vmem [#allocation5], %s258
        %s260 = smul.u32 2, %s26
        %p261 = scmp.lt.s32.totalorder %s25, 1
        %s262 = scalar_select %p261, %s25, 1
        %p263 = scmp.lt.s32.totalorder %s260, 1
        %s264 = scalar_select %p263, %s260, 1
        %s265 = smul.addr %s262, 16
        %s266 = sadd.s32 %s264, %s265
        %s267 = smul.addr %s266, 8
        %s268 = scalar_lea.vmem %s2, %s267
        %s269 = smul.u32 2, %s26
        %s270 = smul.u32 2, %s26
        %s271 = smul.u32 2, %s26
        %v272 = vld [vmem:[%s0] sm:$0xff]
        %v273 = vld [vmem:[%s0 + $0x8] sm:$0xff]
        %v274 = vld [vmem:[%s0 + $0x10] sm:$0xff]
        %v275 = vld [vmem:[%s0 + $0x18] sm:$0xff]
        %v276 = vld [vmem:[%s0 + $0x20] sm:$0xff]
        %v277 = vld [vmem:[%s0 + $0x28] sm:$0xff]
        %v278 = vld [vmem:[%s0 + $0x30] sm:$0xff]
        %v279 = vld [vmem:[%s0 + $0x38] sm:$0xff]
        %v280 = vld [vmem:[%s0 + $0x40] sm:$0xff]
        %v281 = vld [vmem:[%s0 + $0x48] sm:$0xff]
        %v282 = vld [vmem:[%s0 + $0x50] sm:$0xff]
        %v283 = vld [vmem:[%s0 + $0x58] sm:$0xff]
        %v284 = vld [vmem:[%s0 + $0x60] sm:$0xff]
        %v285 = vld [vmem:[%s0 + $0x68] sm:$0xff]
        %v286 = vld [vmem:[%s0 + $0x70] sm:$0xff]
        %v287 = vld [vmem:[%s0 + $0x78] sm:$0xff]
        %v288 = vld [vmem:[%s268] sm:$0xff]
        %v289 = vld [vmem:[%s268 + $0x8] sm:$0xff]
        %v290 = vld [vmem:[%s268 + $0x10] sm:$0xff]
        %v291 = vld [vmem:[%s268 + $0x18] sm:$0xff]
        %v292 = vld [vmem:[%s268 + $0x20] sm:$0xff]
        %v293 = vld [vmem:[%s268 + $0x28] sm:$0xff]
        %v294 = vld [vmem:[%s268 + $0x30] sm:$0xff]
        %v295 = vld [vmem:[%s268 + $0x38] sm:$0xff]
        %v296 = vld [vmem:[%s268 + $0x40] sm:$0xff]
        %v297 = vld [vmem:[%s268 + $0x48] sm:$0xff]
        %v298 = vld [vmem:[%s268 + $0x50] sm:$0xff]
        %v299 = vld [vmem:[%s268 + $0x58] sm:$0xff]
        %v300 = vld [vmem:[%s268 + $0x60] sm:$0xff]
        %v301 = vld [vmem:[%s268 + $0x68] sm:$0xff]
        %v302 = vld [vmem:[%s268 + $0x70] sm:$0xff]
        %v303 = vld [vmem:[%s268 + $0x78] sm:$0xff]
        %v304 = vld [vmem:[%s1] sm:$0xff]
        %v305 = vld [vmem:[%s1 + $0x8] sm:$0xff]
        %v306 = vld [vmem:[%s1 + $0x10] sm:$0xff]
        %v307 = vld [vmem:[%s1 + $0x18] sm:$0xff]
        %v308 = vld [vmem:[%s1 + $0x20] sm:$0xff]
        %v309 = vld [vmem:[%s1 + $0x28] sm:$0xff]
        %v310 = vld [vmem:[%s1 + $0x30] sm:$0xff]
        %v311 = vld [vmem:[%s1 + $0x38] sm:$0xff]
        %v312 = vld [vmem:[%s1 + $0x40] sm:$0xff]
        %v313 = vld [vmem:[%s1 + $0x48] sm:$0xff]
        %v314 = vld [vmem:[%s1 + $0x50] sm:$0xff]
        %v315 = vld [vmem:[%s1 + $0x58] sm:$0xff]
        %v316 = vld [vmem:[%s1 + $0x60] sm:$0xff]
        %v317 = vld [vmem:[%s1 + $0x68] sm:$0xff]
        %v318 = vld [vmem:[%s1 + $0x70] sm:$0xff]
        %v319 = vld [vmem:[%s1 + $0x78] sm:$0xff]
        %321 = vset.pattern.permute.xlu0 0
        %322 = vperm.xlu0 %321, %v304
        %v323 = vpop.permute.xlu0 %322
        %326 = vset.pattern.permute.xlu0 0
        %327 = vperm.xlu0 %326, %v305
        %v328 = vpop.permute.xlu0 %327
        %331 = vset.pattern.permute.xlu0 0
        %332 = vperm.xlu0 %331, %v306
        %v333 = vpop.permute.xlu0 %332
        %336 = vset.pattern.permute.xlu0 0
        %337 = vperm.xlu0 %336, %v307
        %v338 = vpop.permute.xlu0 %337
        %341 = vset.pattern.permute.xlu0 0
        %342 = vperm.xlu0 %341, %v308
        %v343 = vpop.permute.xlu0 %342
        %346 = vset.pattern.permute.xlu0 0
        %347 = vperm.xlu0 %346, %v309
        %v348 = vpop.permute.xlu0 %347
        %351 = vset.pattern.permute.xlu0 0
        %352 = vperm.xlu0 %351, %v310
        %v353 = vpop.permute.xlu0 %352
        %356 = vset.pattern.permute.xlu0 0
        %357 = vperm.xlu0 %356, %v311
        %v358 = vpop.permute.xlu0 %357
        %361 = vset.pattern.permute.xlu0 0
        %362 = vperm.xlu0 %361, %v312
        %v363 = vpop.permute.xlu0 %362
        %366 = vset.pattern.permute.xlu0 0
        %367 = vperm.xlu0 %366, %v313
        %v368 = vpop.permute.xlu0 %367
        %371 = vset.pattern.permute.xlu0 0
        %372 = vperm.xlu0 %371, %v314
        %v373 = vpop.permute.xlu0 %372
        %376 = vset.pattern.permute.xlu0 0
        %377 = vperm.xlu0 %376, %v315
        %v378 = vpop.permute.xlu0 %377
        %381 = vset.pattern.permute.xlu0 0
        %382 = vperm.xlu0 %381, %v316
        %v383 = vpop.permute.xlu0 %382
        %386 = vset.pattern.permute.xlu0 0
        %387 = vperm.xlu0 %386, %v317
        %v388 = vpop.permute.xlu0 %387
        %391 = vset.pattern.permute.xlu0 0
        %392 = vperm.xlu0 %391, %v318
        %v393 = vpop.permute.xlu0 %392
        %396 = vset.pattern.permute.xlu0 0
        %397 = vperm.xlu0 %396, %v319
        %v398 = vpop.permute.xlu0 %397
        %vm400 = vcmask 523264
        %v402 = vsel %vm400, %v272, 0
        %v405 = vsel %vm400, %v273, 0
        %v408 = vsel %vm400, %v274, 0
        %v411 = vsel %vm400, %v275, 0
        %v414 = vsel %vm400, %v276, 0
        %v417 = vsel %vm400, %v277, 0
        %v420 = vsel %vm400, %v278, 0
        %v423 = vsel %vm400, %v279, 0
        %v426 = vsel %vm400, %v280, 0
        %v429 = vsel %vm400, %v281, 0
        %v432 = vsel %vm400, %v282, 0
        %v435 = vsel %vm400, %v283, 0
        %v438 = vsel %vm400, %v284, 0
        %v441 = vsel %vm400, %v285, 0
        %v444 = vsel %vm400, %v286, 0
        %v447 = vsel %vm400, %v287, 0
        %449 = vmatprep.subr.mxu0 %v289
        %450 = vmatpush1.msra.mxu0 %v288
        %451 = vmatprep.subr.mxu0 %v291
        %452 = vmatpush1.msra.mxu0 %v290
        %453 = vmatprep.subr.mxu0 %v293
        %454 = vmatpush1.msra.mxu0 %v292
        %455 = vmatprep.subr.mxu0 %v295
        %456 = vmatpush1.msra.mxu0 %v294
        %457 = vmatprep.subr.mxu0 %v297
        %458 = vmatpush1.msra.mxu0 %v296
        %459 = vmatprep.subr.mxu0 %v299
        %460 = vmatpush1.msra.mxu0 %v298
        %461 = vmatprep.subr.mxu0 %v301
        %462 = vmatpush1.msra.mxu0 %v300
        %463 = vmatprep.subr.mxu0 %v303
        %464 = vmatpush1.msra.mxu0 %v302
        %465 = vmatprep.subr.mxu0 0.0
        %466 = vmatpush1.msra.mxu0 0.0
        %467 = vmatprep.subr.mxu0 0.0
        %468 = vmatpush1.msra.mxu0 0.0
        %469 = vmatprep.subr.mxu0 0.0
        %470 = vmatpush1.msra.mxu0 0.0
        %471 = vmatprep.subr.mxu0 0.0
        %472 = vmatpush1.msra.mxu0 0.0
        %473 = vmatprep.subr.mxu0 0.0
        %474 = vmatpush1.msra.mxu0 0.0
        %475 = vmatprep.subr.mxu0 0.0
        %476 = vmatpush1.msra.mxu0 0.0
        %477 = vmatprep.subr.mxu0 0.0
        %478 = vmatpush1.msra.mxu0 0.0
        %479 = vmatprep.subr.mxu0 0.0
        %480 = vmatpush1.msra.mxu0 0.0
        %481 = vmatprep.subr.mxu0 0.0
        %482 = vmatpush1.msra.mxu0 0.0
        %483 = vmatprep.subr.mxu0 0.0
        %484 = vmatpush1.msra.mxu0 0.0
        %485 = vmatprep.subr.mxu0 0.0
        %486 = vmatpush1.msra.mxu0 0.0
        %487 = vmatprep.subr.mxu0 0.0
        %488 = vmatpush1.msra.mxu0 0.0
        %489 = vmatprep.subr.mxu0 0.0
        %490 = vmatpush1.msra.mxu0 0.0
        %491 = vmatprep.subr.mxu0 0.0
        %492 = vmatpush1.msra.mxu0 0.0
        %493 = vmatprep.subr.mxu0 0.0
        %494 = vmatpush1.msra.mxu0 0.0
        %495 = vmatprep.subr.mxu0 0.0
        %496 = vmatpush1.msra.mxu0 0.0
        %497 = vmatprep.subr.mxu0 0.0
        %498 = vmatpush1.msra.mxu0 0.0
        %499 = vmatprep.subr.mxu0 0.0
        %500 = vmatpush1.msra.mxu0 0.0
        %501 = vmatprep.subr.mxu0 0.0
        %502 = vmatpush1.msra.mxu0 0.0
        %503 = vmatprep.subr.mxu0 0.0
        %504 = vmatpush1.msra.mxu0 0.0
        %505 = vmatprep.subr.mxu0 0.0
        %506 = vmatpush1.msra.mxu0 0.0
        %507 = vmatprep.subr.mxu0 0.0
        %508 = vmatpush1.msra.mxu0 0.0
        %509 = vmatprep.subr.mxu0 0.0
        %510 = vmatpush1.msra.mxu0 0.0
        %511 = vmatprep.subr.mxu0 0.0
        %512 = vmatpush1.msra.mxu0 0.0
        %513 = vmatprep.mubr.f32.mxu0 0.0
        %514 = vmatmul.mubr.f32.gmra.mrb[0].mxu0 %v402
        %v515 = vpop.f32.mrb[0].mxu0
        %v516 = vadd.f32 %v323, %v515
        %v517 = vpop.f32.mrb[0].mxu0
        %v518 = vadd.f32 %v323, %v517
        %519 = vmatprep.mubr.f32.mxu0 0.0
        %520 = vmatmul.mubr.f32.gmra.mrb[0].mxu0 %v405
        %v521 = vpop.f32.mrb[0].mxu0
        %v522 = vadd.f32 %v328, %v521
        %v523 = vpop.f32.mrb[0].mxu0
        %v524 = vadd.f32 %v328, %v523
        %525 = vmatprep.mubr.f32.mxu0 0.0
        %526 = vmatmul.mubr.f32.gmra.mrb[0].mxu0 %v408
        %v527 = vpop.f32.mrb[0].mxu0
        %v528 = vadd.f32 %v333, %v527
        %v529 = vpop.f32.mrb[0].mxu0
        %v530 = vadd.f32 %v333, %v529
        %531 = vmatprep.mubr.f32.mxu0 0.0
        %532 = vmatmul.mubr.f32.gmra.mrb[0].mxu0 %v411
        %v533 = vpop.f32.mrb[0].mxu0
        %v534 = vadd.f32 %v338, %v533
        %v535 = vpop.f32.mrb[0].mxu0
        %v536 = vadd.f32 %v338, %v535
        %537 = vmatprep.mubr.f32.mxu0 0.0
        %538 = vmatmul.mubr.f32.gmra.mrb[0].mxu0 %v414
        %v539 = vpop.f32.mrb[0].mxu0
        %v540 = vadd.f32 %v343, %v539
        %v541 = vpop.f32.mrb[0].mxu0
        %v542 = vadd.f32 %v343, %v541
        %543 = vmatprep.mubr.f32.mxu0 0.0
        %544 = vmatmul.mubr.f32.gmra.mrb[0].mxu0 %v417
        %v545 = vpop.f32.mrb[0].mxu0
        %v546 = vadd.f32 %v348, %v545
        %v547 = vpop.f32.mrb[0].mxu0
        %v548 = vadd.f32 %v348, %v547
        %549 = vmatprep.mubr.f32.mxu0 0.0
        %550 = vmatmul.mubr.f32.gmra.mrb[0].mxu0 %v420
        %v551 = vpop.f32.mrb[0].mxu0
        %v552 = vadd.f32 %v353, %v551
        %v553 = vpop.f32.mrb[0].mxu0
        %v554 = vadd.f32 %v353, %v553
        %555 = vmatprep.mubr.f32.mxu0 0.0
        %556 = vmatmul.mubr.f32.gmra.mrb[0].mxu0 %v423
        %v557 = vpop.f32.mrb[0].mxu0
        %v558 = vadd.f32 %v358, %v557
        %v559 = vpop.f32.mrb[0].mxu0
        %v560 = vadd.f32 %v358, %v559
        %561 = vmatprep.mubr.f32.mxu0 0.0
        %562 = vmatmul.mubr.f32.gmra.mrb[0].mxu0 %v426
        %v563 = vpop.f32.mrb[0].mxu0
        %v564 = vadd.f32 %v363, %v563
        %v565 = vpop.f32.mrb[0].mxu0
        %v566 = vadd.f32 %v363, %v565
        %567 = vmatprep.mubr.f32.mxu0 0.0
        %568 = vmatmul.mubr.f32.gmra.mrb[0].mxu0 %v429
        %v569 = vpop.f32.mrb[0].mxu0
        %v570 = vadd.f32 %v368, %v569
        %v571 = vpop.f32.mrb[0].mxu0
        %v572 = vadd.f32 %v368, %v571
        %573 = vmatprep.mubr.f32.mxu0 0.0
        %574 = vmatmul.mubr.f32.gmra.mrb[0].mxu0 %v432
        %v575 = vpop.f32.mrb[0].mxu0
        %v576 = vadd.f32 %v373, %v575
        %v577 = vpop.f32.mrb[0].mxu0
        %v578 = vadd.f32 %v373, %v577
        %579 = vmatprep.mubr.f32.mxu0 0.0
        %580 = vmatmul.mubr.f32.gmra.mrb[0].mxu0 %v435
        %v581 = vpop.f32.mrb[0].mxu0
        %v582 = vadd.f32 %v378, %v581
        %v583 = vpop.f32.mrb[0].mxu0
        %v584 = vadd.f32 %v378, %v583
        %585 = vmatprep.mubr.f32.mxu0 0.0
        %586 = vmatmul.mubr.f32.gmra.mrb[0].mxu0 %v438
        %v587 = vpop.f32.mrb[0].mxu0
        %v588 = vadd.f32 %v383, %v587
        %v589 = vpop.f32.mrb[0].mxu0
        %v590 = vadd.f32 %v383, %v589
        %591 = vmatprep.mubr.f32.mxu0 0.0
        %592 = vmatmul.mubr.f32.gmra.mrb[0].mxu0 %v441
        %v593 = vpop.f32.mrb[0].mxu0
        %v594 = vadd.f32 %v388, %v593
        %v595 = vpop.f32.mrb[0].mxu0
        %v596 = vadd.f32 %v388, %v595
        %597 = vmatprep.mubr.f32.mxu0 0.0
        %598 = vmatmul.mubr.f32.gmra.mrb[0].mxu0 %v444
        %v599 = vpop.f32.mrb[0].mxu0
        %v600 = vadd.f32 %v393, %v599
        %v601 = vpop.f32.mrb[0].mxu0
        %v602 = vadd.f32 %v393, %v601
        %603 = vmatprep.mubr.f32.mxu0 0.0
        %604 = vmatmul.mubr.f32.gmra.mrb[0].mxu0 %v447
        %v605 = vpop.f32.mrb[0].mxu0
        %v606 = vadd.f32 %v398, %v605
        %v607 = vpop.f32.mrb[0].mxu0
        %v608 = vadd.f32 %v398, %v607
        %609 = vdwg.mxu0
        %v610 = vmax.f32 %v516, 0.0
        %v611 = vmax.f32 %v518, 0.0
        %v612 = vmax.f32 %v522, 0.0
        %v613 = vmax.f32 %v524, 0.0
        %v614 = vmax.f32 %v528, 0.0
        %v615 = vmax.f32 %v530, 0.0
        %v616 = vmax.f32 %v534, 0.0
        %v617 = vmax.f32 %v536, 0.0
        %v618 = vmax.f32 %v540, 0.0
        %v619 = vmax.f32 %v542, 0.0
        %v620 = vmax.f32 %v546, 0.0
        %v621 = vmax.f32 %v548, 0.0
        %v622 = vmax.f32 %v552, 0.0
        %v623 = vmax.f32 %v554, 0.0
        %v624 = vmax.f32 %v558, 0.0
        %v625 = vmax.f32 %v560, 0.0
        %v626 = vmax.f32 %v564, 0.0
        %v627 = vmax.f32 %v566, 0.0
        %v628 = vmax.f32 %v570, 0.0
        %v629 = vmax.f32 %v572, 0.0
        %v630 = vmax.f32 %v576, 0.0
        %v631 = vmax.f32 %v578, 0.0
        %v632 = vmax.f32 %v582, 0.0
        %v633 = vmax.f32 %v584, 0.0
        %v634 = vmax.f32 %v588, 0.0
        %v635 = vmax.f32 %v590, 0.0
        %v636 = vmax.f32 %v594, 0.0
        %v637 = vmax.f32 %v596, 0.0
        %v638 = vmax.f32 %v600, 0.0
        %v639 = vmax.f32 %v602, 0.0
        %v640 = vmax.f32 %v606, 0.0
        %v641 = vmax.f32 %v608, 0.0
        %v642 = vld [vmem:[%s226] sm:$0xff]
        %v643 = vld [vmem:[%s226 + $0x8] sm:$0xff]
        %v644 = vld [vmem:[%s226 + $0x10] sm:$0xff]
        %v645 = vld [vmem:[%s226 + $0x18] sm:$0xff]
        %v646 = vld [vmem:[%s226 + $0x20] sm:$0xff]
        %v647 = vld [vmem:[%s226 + $0x28] sm:$0xff]
        %v648 = vld [vmem:[%s226 + $0x30] sm:$0xff]
        %v649 = vld [vmem:[%s226 + $0x38] sm:$0xff]
        %v650 = vld [vmem:[%s226 + $0x40] sm:$0xff]
        %v651 = vld [vmem:[%s226 + $0x48] sm:$0xff]
        %v652 = vld [vmem:[%s226 + $0x50] sm:$0xff]
        %v653 = vld [vmem:[%s226 + $0x58] sm:$0xff]
        %v654 = vld [vmem:[%s226 + $0x60] sm:$0xff]
        %v655 = vld [vmem:[%s226 + $0x68] sm:$0xff]
        %v656 = vld [vmem:[%s226 + $0x70] sm:$0xff]
        %v657 = vld [vmem:[%s226 + $0x78] sm:$0xff]
        %v658 = vld [vmem:[%s226 + $0x80] sm:$0xff]
        %v659 = vld [vmem:[%s226 + $0x88] sm:$0xff]
        %v660 = vld [vmem:[%s226 + $0x90] sm:$0xff]
        %v661 = vld [vmem:[%s226 + $0x98] sm:$0xff]
        %v662 = vld [vmem:[%s226 + $0xa0] sm:$0xff]
        %v663 = vld [vmem:[%s226 + $0xa8] sm:$0xff]
        %v664 = vld [vmem:[%s226 + $0xb0] sm:$0xff]
        %v665 = vld [vmem:[%s226 + $0xb8] sm:$0xff]
        %v666 = vld [vmem:[%s226 + $0xc0] sm:$0xff]
        %v667 = vld [vmem:[%s226 + $0xc8] sm:$0xff]
        %v668 = vld [vmem:[%s226 + $0xd0] sm:$0xff]
        %v669 = vld [vmem:[%s226 + $0xd8] sm:$0xff]
        %v670 = vld [vmem:[%s226 + $0xe0] sm:$0xff]
        %v671 = vld [vmem:[%s226 + $0xe8] sm:$0xff]
        %v672 = vld [vmem:[%s226 + $0xf0] sm:$0xff]
        %v673 = vld [vmem:[%s226 + $0xf8] sm:$0xff]
        %v674 = vadd.f32 %v610, %v642
        %v675 = vadd.f32 %v611, %v643
        %v676 = vadd.f32 %v612, %v644
        %v677 = vadd.f32 %v613, %v645
        %v678 = vadd.f32 %v614, %v646
        %v679 = vadd.f32 %v615, %v647
        %v680 = vadd.f32 %v616, %v648
        %v681 = vadd.f32 %v617, %v649
        %v682 = vadd.f32 %v618, %v650
        %v683 = vadd.f32 %v619, %v651
        %v684 = vadd.f32 %v620, %v652
        %v685 = vadd.f32 %v621, %v653
        %v686 = vadd.f32 %v622, %v654
        %v687 = vadd.f32 %v623, %v655
        %v688 = vadd.f32 %v624, %v656
        %v689 = vadd.f32 %v625, %v657
        %v690 = vadd.f32 %v626, %v658
        %v691 = vadd.f32 %v627, %v659
        %v692 = vadd.f32 %v628, %v660
        %v693 = vadd.f32 %v629, %v661
        %v694 = vadd.f32 %v630, %v662
        %v695 = vadd.f32 %v631, %v663
        %v696 = vadd.f32 %v632, %v664
        %v697 = vadd.f32 %v633, %v665
        %v698 = vadd.f32 %v634, %v666
        %v699 = vadd.f32 %v635, %v667
        %v700 = vadd.f32 %v636, %v668
        %v701 = vadd.f32 %v637, %v669
        %v702 = vadd.f32 %v638, %v670
        %v703 = vadd.f32 %v639, %v671
        %v704 = vadd.f32 %v640, %v672
        %v705 = vadd.f32 %v641, %v673
        %706 = vst [vmem:[%s259] sm:$0xff] %v674
        %707 = vst [vmem:[%s259 + $0x8] sm:$0xff] %v675
        %708 = vst [vmem:[%s259 + $0x10] sm:$0xff] %v676
        %709 = vst [vmem:[%s259 + $0x18] sm:$0xff] %v677
        %710 = vst [vmem:[%s259 + $0x20] sm:$0xff] %v678
        %711 = vst [vmem:[%s259 + $0x28] sm:$0xff] %v679
        %712 = vst [vmem:[%s259 + $0x30] sm:$0xff] %v680
        %713 = vst [vmem:[%s259 + $0x38] sm:$0xff] %v681
        %714 = vst [vmem:[%s259 + $0x40] sm:$0xff] %v682
        %715 = vst [vmem:[%s259 + $0x48] sm:$0xff] %v683
        %716 = vst [vmem:[%s259 + $0x50] sm:$0xff] %v684
        %717 = vst [vmem:[%s259 + $0x58] sm:$0xff] %v685
        %718 = vst [vmem:[%s259 + $0x60] sm:$0xff] %v686
        %719 = vst [vmem:[%s259 + $0x68] sm:$0xff] %v687
        %720 = vst [vmem:[%s259 + $0x70] sm:$0xff] %v688
        %721 = vst [vmem:[%s259 + $0x78] sm:$0xff] %v689
        %722 = vst [vmem:[%s259 + $0x80] sm:$0xff] %v690
        %723 = vst [vmem:[%s259 + $0x88] sm:$0xff] %v691
        %724 = vst [vmem:[%s259 + $0x90] sm:$0xff] %v692
        %725 = vst [vmem:[%s259 + $0x98] sm:$0xff] %v693
        %726 = vst [vmem:[%s259 + $0xa0] sm:$0xff] %v694
        %727 = vst [vmem:[%s259 + $0xa8] sm:$0xff] %v695
        %728 = vst [vmem:[%s259 + $0xb0] sm:$0xff] %v696
        %729 = vst [vmem:[%s259 + $0xb8] sm:$0xff] %v697
        %730 = vst [vmem:[%s259 + $0xc0] sm:$0xff] %v698
        %731 = vst [vmem:[%s259 + $0xc8] sm:$0xff] %v699
        %732 = vst [vmem:[%s259 + $0xd0] sm:$0xff] %v700
        %733 = vst [vmem:[%s259 + $0xd8] sm:$0xff] %v701
        %734 = vst [vmem:[%s259 + $0xe0] sm:$0xff] %v702
        %735 = vst [vmem:[%s259 + $0xe8] sm:$0xff] %v703
        %736 = vst [vmem:[%s259 + $0xf0] sm:$0xff] %v704
        %737 = vst [vmem:[%s259 + $0xf8] sm:$0xff] %v705
        %s738 = sand.u32 %s141, 1
        %s739 = scalar_lea.sflag [#allocation4], %s738
        %s740 = sand.u32 %s141, 1
        %s741 = smul.addr %s740, 256
        %s742 = scalar_lea.vmem [#allocation5], %s741
        // Predicated region
        $region41: #{tpu_custom_call.1} parent=35 // pred_check
          %p743 = pneg %p151
        $region42: #{tpu_custom_call.1} parent=35 // pred_check_branch
          %745 = sbr.rel (%p743) target = $region44
        $region43: #{tpu_custom_call.1} parent=35 // pred_region
          %s746 = smul.u32 2, %s26
          %s748 = ssub.s32 4096, 4096
          %749 = vsyncadd %s739, %s748
          %s750 = smul.addr %s25, 32
          %s751 = sadd.s32 %s746, %s750
          %s752 = smul.addr %s751, 128
          %s753 = scalar_lea.hbm %s4, %s752
          %s754 = sshll.u32 %s742, 4
          %s755 = int_to_ptr.vmem [resolvable:$true] %s754
          %760 = dma.vmem_to_hbm [thread:$0]  %s755, 4096, %s753, %s739, 256, 256, 16
        $region44: #{tpu_custom_call.1} parent=35 // pred_fallthru
          _
      $region36: #{tpu_custom_call.1} parent=5 // pred_fallthru
        _
      %p761 = scmp.le.s32.totalorder 2, %s16
      // Predicated region
      $region45: #{tpu_custom_call.1} parent=5 // pred_check
        %p762 = pneg %p761
      $region46: #{tpu_custom_call.1} parent=5 // pred_check_branch
        %764 = sbr.rel (%p762) target = $region48
      $region47: #{tpu_custom_call.1} parent=5 // pred_region
        %s765 = ssub.s32 %s16, 2
        // Predicated region
        $region49: #{tpu_custom_call.1} parent=47 // pred_check
          %p766 = pneg %p157
        $region50: #{tpu_custom_call.1} parent=47 // pred_check_branch
          %768 = sbr.rel (%p766) target = $region52
        $region51: #{tpu_custom_call.1} parent=47 // pred_region
          %s769 = sand.u32 %s142, 1
          %s770 = scalar_lea.sflag [#allocation4], %s769
          %s771 = sand.u32 %s142, 1
          %s772 = smul.addr %s771, 256
          %s773 = scalar_lea.vmem [#allocation5], %s772
          %774 = dma.done %s770, 4096
        $region52: #{tpu_custom_call.1} parent=47 // pred_fallthru
          _
      $region48: #{tpu_custom_call.1} parent=5 // pred_fallthru
        _
    $region6: #{tpu_custom_call.1} parent=1 // loop_footer
      %s20 = sadd.s32 1, %s16
    $region7: #{tpu_custom_call.1} parent=1 // loop_footer_branch
      %15 = sbr.rel target = $region3
    $region8: #{tpu_custom_call.1} parent=1 // loop_exit
      _
    %775 = vsyncpa [#allocation3], 1
    %s776 = scalar_lea.sflag [#allocation3], 1
    %777 = vsyncpa %s776, 1
    %778 = vsyncpa [#allocation4], 1
    %s779 = scalar_lea.sflag [#allocation4], 1
    %780 = vsyncpa %s779, 1

</llo_original>
